<compile_context>
chip_gen: v7x
topology: tpu7x:2x2x1
jax: 0.10.0
libtpu: 0.0.40
codegen_flags: <defaults>
</compile_context>

<pallas_src>
import numpy as np
import jax
import jax.numpy as jnp
from jax.experimental import pallas as pl
from jax.experimental.pallas import tpu as pltpu


def _softplus(x):
    # numerically stable log(1 + exp(x)) using only exp/log (Mosaic-friendly)
    return jnp.maximum(x, 0.0) + jnp.log(1.0 + jnp.exp(-jnp.abs(x)))


def _log_g(x):
    return jnp.where(x >= 0.0, jnp.log(jnp.maximum(x, 0.0) + 0.5), -_softplus(-x))


def minlstm_forward(x, h0, wf, bf, wi, bi, wh, bh):
    B, T, I = x.shape
    H = wf.shape[0]
    assert B == T == H, "the reference code's broadcasting requires B == T == H"
    f32 = jnp.float32
    TH = T * H
    C = (T + 1) * H                 # useful lane-folded (t, h) width per q
    C_pad = 128                     # lane-tile aligned per-q width
    assert C <= C_pad, "TODO(synk): tile the folded (t,h) axis when (T+1)*H > 128"

    # ---- wrapper-side constants (tiny, built at trace time) -----------------
    x2 = x.reshape(B, T * I).astype(f32)
    # h_0 padded to a full lane tile; only lanes [0, H) are consumed in-kernel.
    h0_pad = jnp.zeros((B, C_pad), f32).at[:, :H].set(h0.reshape(B, H).astype(f32))

    # Fused block-diagonal gate weight, each gate in its own 128-wide section,
    # columns already shifted to their destination lanes:
    #   w_block[s*I + k, g*C_pad + (t+1)*H + h] = W_g[h, k] * [s == t]
    w_kgh = jnp.stack([wf, wi, wh], axis=0).transpose(2, 0, 1).astype(f32)    # (I, 3, H)
    eye_t = jnp.eye(T, dtype=f32)
    core = eye_t[:, None, None, :, None] * w_kgh[None, :, :, None, :]         # (T,I,3,T,H)
    w_sec = core.reshape(T * I, 3, TH)
    w_block = (jnp.zeros((T * I, 3, C_pad), f32)
               .at[:, :, H:H + TH].set(w_sec)
               .reshape(T * I, 3 * C_pad))
    b_sec = jnp.broadcast_to(
        jnp.stack([bf, bi, bh], axis=0).astype(f32)[:, None, :], (3, T, H)
    ).reshape(3, TH)
    b_block = (jnp.zeros((3, C_pad), f32)
               .at[:, H:H + TH].set(b_sec)
               .reshape(1, 3 * C_pad))

    # Prefix-sum / hidden-shift selection mask (host-built constant, one DMA):
    #   mask[(s+1)*H + j, q*C_pad + t*H + h] = [s <= q] * [j == t - 1]
    # Rows outside [H, H+TH) and columns outside [H, C) within each q block are
    # zero, so padded gate lanes never contribute and a_wide is 0 at t == 0.
    r_np = np.arange(C_pad)
    col_np = np.arange(B * C_pad)
    cc = col_np % C_pad
    s_row = r_np // H - 1
    j_row = r_np % H
    q_col = col_np // C_pad
    t_col = cc // H
    mask_np = ((r_np[:, None] >= H) & (r_np[:, None] < H + TH)
               & (cc[None, :] >= H) & (cc[None, :] < C)
               & (s_row[:, None] <= q_col[None, :])
               & (j_row[:, None] == t_col[None, :] - 1)).astype(np.float32)
    mask = jnp.asarray(mask_np)                                               # (128, B*128)

    def kernel(x_ref, h0_ref, w_ref, b_ref, mask_ref, out_ref):
        # One fused MXU pass for all three gates; every gate section is a full,
        # 128-aligned lane tile so the slices below are free.
        g = jnp.dot(x_ref[...], w_ref[...], preferred_element_type=f32) + b_ref[...]
        f2 = g[:, 0 * C_pad:1 * C_pad]
        i2 = g[:, 1 * C_pad:2 * C_pad]
        h2 = g[:, 2 * C_pad:3 * C_pad]

        diff = _softplus(-f2) - _softplus(-i2)
        log_f = -_softplus(diff)                     # (B, C_pad), data lanes [H, H+TH)
        log_ih = -_softplus(-diff) + _log_g(h2)      # (B, C_pad), data lanes [H, H+TH)

        # log-values V[q, t*H + h]: t == 0 -> log_g(h_0), t >= 1 -> log_ih (already
        # sitting in its destination lanes thanks to the shifted weight layout).
        lane = jax.lax.broadcasted_iota(jnp.int32, (B, C_pad), 1)
        v_all = jnp.where(lane < H, _log_g(h0_ref[...]), log_ih)              # (B, C_pad)

        # a*[p, q, t] (h-broadcast, zero at t == 0), all (q, t, h) in one matmul.
        a_wide = jnp.dot(log_f, mask_ref[...], preferred_element_type=f32)    # (B, B*C_pad)

        # Two-pass logcumsumexp over q (matches the reference's global-max form):
        #   pass 1: z_q and the global max (VPU-only serial chain),
        #   pass 2: exp(z_q - m), no cross-q dependence (EUP pipelines freely),
        #   pass 3: running prefix sum + full-tile stores.
        z = [v_all[q:q + 1, :] - a_wide[:, q * C_pad:(q + 1) * C_pad] for q in range(B)]
        m = z[0]
        for q in range(1, B):
            m = jnp.maximum(m, z[q])
        e = [jnp.exp(zq - m) for zq in z]
        s = jnp.zeros((B, C_pad), f32)
        for q in range(B):
            s = s + e[q]
            out_ref[:, q * C_pad:(q + 1) * C_pad] = s * jnp.exp(
                a_wide[:, q * C_pad:(q + 1) * C_pad] + m)

    def _spec(shape):
        zeros = (0,) * len(shape)
        return pl.BlockSpec(shape, lambda i, zeros=zeros: zeros)

    out2 = pl.pallas_call(
        kernel,
        out_shape=jax.ShapeDtypeStruct((B, B * C_pad), f32),
        grid=(1,),
        in_specs=[_spec(x2.shape), _spec(h0_pad.shape), _spec(w_block.shape),
                  _spec(b_block.shape), _spec(mask.shape)],
        out_specs=_spec((B, B * C_pad)),
        compiler_params=pltpu.CompilerParams(dimension_semantics=("arbitrary",)),
    )(x2, h0_pad, w_block, b_block, mask)

    # cheap wrapper-side slice + reshape: (p, q*C_pad) -> (p, q, t, h)
    return out2.reshape(B, B, C_pad)[:, :, :C].reshape(B, B, T + 1, H)


def minlstm_reference(x, h0, wf, bf, wi, bi, wh, bh):
    """Plain-JAX mirror of the PyTorch forward (including its broadcasting)."""
    sp = jax.nn.softplus

    def log_g(t):
        return jnp.where(t >= 0, jnp.log(jax.nn.relu(t) + 0.5), -sp(-t))

    f = jnp.einsum('bti,hi->bth', x, wf) + bf
    i = jnp.einsum('bti,hi->bth', x, wi) + bi
    hh = jnp.einsum('bti,hi->bth', x, wh) + bh
    diff = sp(-f) - sp(-i)
    log_f = -sp(diff)
    log_i = -sp(-diff)
    log_values = jnp.concatenate([log_g(h0), log_i + log_g(hh)], axis=1)       # (B, T+1, H)
    a_star = jnp.pad(jnp.cumsum(log_f, axis=1), ((0, 0), (0, 0), (1, 0)))      # (B, T, H+1)
    z = log_values[None, :, :, :] - a_star[:, :, :, None]                      # (B, B, T+1, H)
    m = jnp.max(z, axis=1, keepdims=True)
    lcse = jnp.log(jnp.cumsum(jnp.exp(z - m), axis=1)) + m
    return jnp.exp(a_star[:, :, :, None] + lcse)


if __name__ == "__main__":
    key = jax.random.PRNGKey(0)
    B = T = H = 8     # reference broadcasting requires B == T == H
    I = 16
    ks = jax.random.split(key, 8)
    bound = 1.0 / np.sqrt(I)
    wf = jax.random.uniform(ks[0], (H, I), jnp.float32, -bound, bound)
    bf = jax.random.uniform(ks[1], (H,), jnp.float32, -bound, bound)
    wi = jax.random.uniform(ks[2], (H, I), jnp.float32, -bound, bound)
    bi = jax.random.uniform(ks[3], (H,), jnp.float32, -bound, bound)
    wh = jax.random.uniform(ks[4], (H, I), jnp.float32, -bound, bound)
    bh = jax.random.uniform(ks[5], (H,), jnp.float32, -bound, bound)
    x = jax.random.normal(ks[6], (B, T, I), jnp.float32)
    h0 = jax.random.normal(ks[7], (B, 1, H), jnp.float32)

    out = jax.block_until_ready(minlstm_forward(x, h0, wf, bf, wi, bi, wh, bh))
    ref = jax.block_until_ready(minlstm_reference(x, h0, wf, bf, wi, bi, wh, bh))

    assert out.shape == (B, B, T + 1, H), out.shape
    assert bool(jnp.all(jnp.isfinite(out)))
    assert bool(jnp.allclose(out, ref, rtol=1e-3, atol=1e-3)), float(jnp.max(jnp.abs(out - ref)))
    print("KERNEL_OK")
</pallas_src>

<mosaic_0001>
module attributes {stable_mosaic.version = 11 : i64} {
  func.func @kernel(%arg0: i32, %arg1: memref<8x128xf32, #tpu.memory_space<vmem>>, %arg2: memref<8x128xf32, #tpu.memory_space<vmem>>, %arg3: memref<128x384xf32, #tpu.memory_space<vmem>>, %arg4: memref<1x384xf32, #tpu.memory_space<vmem>>, %arg5: memref<128x1024xf32, #tpu.memory_space<vmem>>, %arg6: memref<8x1024xf32, #tpu.memory_space<vmem>>) attributes {dimension_semantics = [#tpu.dimension_semantics<arbitrary>], iteration_bounds = array<i64: 1>, scalar_prefetch = 0 : i64, scratch_operands = 0 : i64, tpu.core_type = #tpu.core_type<tc>, window_params = [{pipeline_mode = #tpu.pipeline_mode<synchronous>, transform_indices = @transform_0, window_bounds = array<i64: 8, 128>}, {pipeline_mode = #tpu.pipeline_mode<synchronous>, transform_indices = @transform_1, window_bounds = array<i64: 8, 128>}, {pipeline_mode = #tpu.pipeline_mode<synchronous>, transform_indices = @transform_2, window_bounds = array<i64: 128, 384>}, {pipeline_mode = #tpu.pipeline_mode<synchronous>, transform_indices = @transform_3, window_bounds = array<i64: 1, 384>}, {pipeline_mode = #tpu.pipeline_mode<synchronous>, transform_indices = @transform_4, window_bounds = array<i64: 128, 1024>}, {pipeline_mode = #tpu.pipeline_mode<synchronous>, transform_indices = @transform_5, window_bounds = array<i64: 8, 1024>}]} {
    %c0 = arith.constant 0 : index
    %c0_0 = arith.constant 0 : index
    %0 = vector.load %arg1[%c0, %c0_0] : memref<8x128xf32, #tpu.memory_space<vmem>>, vector<8x128xf32>
    %c0_1 = arith.constant 0 : index
    %c0_2 = arith.constant 0 : index
    %1 = vector.load %arg3[%c0_1, %c0_2] : memref<128x384xf32, #tpu.memory_space<vmem>>, vector<128x384xf32>
    %cst = arith.constant dense<0.000000e+00> : vector<8x384xf32>
    %2 = tpu.matmul %0, %1, %cst {dimension_numbers = #tpu.dot_dimension_numbers<[1], [0], [0], [1], [0, 0, 1, 1], [], []>} : vector<8x128xf32>, vector<128x384xf32>, vector<8x384xf32> -> vector<8x384xf32>
    %c0_3 = arith.constant 0 : index
    %c0_4 = arith.constant 0 : index
    %3 = vector.load %arg4[%c0_3, %c0_4] : memref<1x384xf32, #tpu.memory_space<vmem>>, vector<1x384xf32>
    %4 = vector.broadcast %3 : vector<1x384xf32> to vector<8x384xf32>
    %5 = arith.addf %2, %4 : vector<8x384xf32>
    %6 = vector.extract_strided_slice %5 {offsets = [0, 0], sizes = [8, 128], strides = [1, 1]} : vector<8x384xf32> to vector<8x128xf32>
    %7 = vector.extract_strided_slice %5 {offsets = [0, 128], sizes = [8, 128], strides = [1, 1]} : vector<8x384xf32> to vector<8x128xf32>
    %8 = vector.extract_strided_slice %5 {offsets = [0, 256], sizes = [8, 128], strides = [1, 1]} : vector<8x384xf32> to vector<8x128xf32>
    %cst_5 = arith.constant 0.000000e+00 : f32
    %9 = vector.broadcast %cst_5 : f32 to vector<8x128xf32>
    %10 = arith.subf %9, %6 : vector<8x128xf32>
    %cst_6 = arith.constant 0.000000e+00 : f32
    %11 = vector.broadcast %cst_6 : f32 to vector<8x128xf32>
    %12 = arith.maximumf %10, %11 : vector<8x128xf32>
    %13 = math.absf %10 : vector<8x128xf32>
    %cst_7 = arith.constant 0.000000e+00 : f32
    %14 = vector.broadcast %cst_7 : f32 to vector<8x128xf32>
    %15 = arith.subf %14, %13 : vector<8x128xf32>
    %16 = math.exp %15 : vector<8x128xf32>
    %cst_8 = arith.constant 1.000000e+00 : f32
    %17 = vector.broadcast %cst_8 : f32 to vector<8x128xf32>
    %18 = arith.addf %17, %16 : vector<8x128xf32>
    %19 = math.log %18 : vector<8x128xf32>
    %20 = arith.addf %12, %19 : vector<8x128xf32>
    %cst_9 = arith.constant 0.000000e+00 : f32
    %21 = vector.broadcast %cst_9 : f32 to vector<8x128xf32>
    %22 = arith.subf %21, %7 : vector<8x128xf32>
    %cst_10 = arith.constant 0.000000e+00 : f32
    %23 = vector.broadcast %cst_10 : f32 to vector<8x128xf32>
    %24 = arith.maximumf %22, %23 : vector<8x128xf32>
    %25 = math.absf %22 : vector<8x128xf32>
    %cst_11 = arith.constant 0.000000e+00 : f32
    %26 = vector.broadcast %cst_11 : f32 to vector<8x128xf32>
    %27 = arith.subf %26, %25 : vector<8x128xf32>
    %28 = math.exp %27 : vector<8x128xf32>
    %cst_12 = arith.constant 1.000000e+00 : f32
    %29 = vector.broadcast %cst_12 : f32 to vector<8x128xf32>
    %30 = arith.addf %29, %28 : vector<8x128xf32>
    %31 = math.log %30 : vector<8x128xf32>
    %32 = arith.addf %24, %31 : vector<8x128xf32>
    %33 = arith.subf %20, %32 : vector<8x128xf32>
    %cst_13 = arith.constant 0.000000e+00 : f32
    %34 = vector.broadcast %cst_13 : f32 to vector<8x128xf32>
    %35 = arith.maximumf %33, %34 : vector<8x128xf32>
    %36 = math.absf %33 : vector<8x128xf32>
    %cst_14 = arith.constant 0.000000e+00 : f32
    %37 = vector.broadcast %cst_14 : f32 to vector<8x128xf32>
    %38 = arith.subf %37, %36 : vector<8x128xf32>
    %39 = math.exp %38 : vector<8x128xf32>
    %cst_15 = arith.constant 1.000000e+00 : f32
    %40 = vector.broadcast %cst_15 : f32 to vector<8x128xf32>
    %41 = arith.addf %40, %39 : vector<8x128xf32>
    %42 = math.log %41 : vector<8x128xf32>
    %43 = arith.addf %35, %42 : vector<8x128xf32>
    %cst_16 = arith.constant 0.000000e+00 : f32
    %44 = vector.broadcast %cst_16 : f32 to vector<8x128xf32>
    %45 = arith.subf %44, %43 : vector<8x128xf32>
    %cst_17 = arith.constant 0.000000e+00 : f32
    %46 = vector.broadcast %cst_17 : f32 to vector<8x128xf32>
    %47 = arith.subf %46, %33 : vector<8x128xf32>
    %cst_18 = arith.constant 0.000000e+00 : f32
    %48 = vector.broadcast %cst_18 : f32 to vector<8x128xf32>
    %49 = arith.maximumf %47, %48 : vector<8x128xf32>
    %50 = math.absf %47 : vector<8x128xf32>
    %cst_19 = arith.constant 0.000000e+00 : f32
    %51 = vector.broadcast %cst_19 : f32 to vector<8x128xf32>
    %52 = arith.subf %51, %50 : vector<8x128xf32>
    %53 = math.exp %52 : vector<8x128xf32>
    %cst_20 = arith.constant 1.000000e+00 : f32
    %54 = vector.broadcast %cst_20 : f32 to vector<8x128xf32>
    %55 = arith.addf %54, %53 : vector<8x128xf32>
    %56 = math.log %55 : vector<8x128xf32>
    %57 = arith.addf %49, %56 : vector<8x128xf32>
    %cst_21 = arith.constant 0.000000e+00 : f32
    %58 = vector.broadcast %cst_21 : f32 to vector<8x128xf32>
    %59 = arith.subf %58, %57 : vector<8x128xf32>
    %cst_22 = arith.constant 0.000000e+00 : f32
    %60 = vector.broadcast %cst_22 : f32 to vector<8x128xf32>
    %61 = arith.cmpf oge, %8, %60 : vector<8x128xf32>
    %cst_23 = arith.constant 0.000000e+00 : f32
    %62 = vector.broadcast %cst_23 : f32 to vector<8x128xf32>
    %63 = arith.maximumf %8, %62 : vector<8x128xf32>
    %cst_24 = arith.constant 5.000000e-01 : f32
    %64 = vector.broadcast %cst_24 : f32 to vector<8x128xf32>
    %65 = arith.addf %63, %64 : vector<8x128xf32>
    %66 = math.log %65 : vector<8x128xf32>
    %cst_25 = arith.constant 0.000000e+00 : f32
    %67 = vector.broadcast %cst_25 : f32 to vector<8x128xf32>
    %68 = arith.subf %67, %8 : vector<8x128xf32>
    %cst_26 = arith.constant 0.000000e+00 : f32
    %69 = vector.broadcast %cst_26 : f32 to vector<8x128xf32>
    %70 = arith.maximumf %68, %69 : vector<8x128xf32>
    %71 = math.absf %68 : vector<8x128xf32>
    %cst_27 = arith.constant 0.000000e+00 : f32
    %72 = vector.broadcast %cst_27 : f32 to vector<8x128xf32>
    %73 = arith.subf %72, %71 : vector<8x128xf32>
    %74 = math.exp %73 : vector<8x128xf32>
    %cst_28 = arith.constant 1.000000e+00 : f32
    %75 = vector.broadcast %cst_28 : f32 to vector<8x128xf32>
    %76 = arith.addf %75, %74 : vector<8x128xf32>
    %77 = math.log %76 : vector<8x128xf32>
    %78 = arith.addf %70, %77 : vector<8x128xf32>
    %cst_29 = arith.constant 0.000000e+00 : f32
    %79 = vector.broadcast %cst_29 : f32 to vector<8x128xf32>
    %80 = arith.subf %79, %78 : vector<8x128xf32>
    %81 = arith.select %61, %66, %80 : vector<8x128xi1>, vector<8x128xf32>
    %82 = arith.addf %59, %81 : vector<8x128xf32>
    %83 = tpu.iota {dimensions = array<i32: 1>} : vector<8x128xi32>
    %c8_i32 = arith.constant 8 : i32
    %84 = vector.broadcast %c8_i32 : i32 to vector<8x128xi32>
    %85 = arith.cmpi slt, %83, %84 : vector<8x128xi32>
    %c0_30 = arith.constant 0 : index
    %c0_31 = arith.constant 0 : index
    %86 = vector.load %arg2[%c0_30, %c0_31] : memref<8x128xf32, #tpu.memory_space<vmem>>, vector<8x128xf32>
    %cst_32 = arith.constant 0.000000e+00 : f32
    %87 = vector.broadcast %cst_32 : f32 to vector<8x128xf32>
    %88 = arith.cmpf oge, %86, %87 : vector<8x128xf32>
    %cst_33 = arith.constant 0.000000e+00 : f32
    %89 = vector.broadcast %cst_33 : f32 to vector<8x128xf32>
    %90 = arith.maximumf %86, %89 : vector<8x128xf32>
    %cst_34 = arith.constant 5.000000e-01 : f32
    %91 = vector.broadcast %cst_34 : f32 to vector<8x128xf32>
    %92 = arith.addf %90, %91 : vector<8x128xf32>
    %93 = math.log %92 : vector<8x128xf32>
    %cst_35 = arith.constant 0.000000e+00 : f32
    %94 = vector.broadcast %cst_35 : f32 to vector<8x128xf32>
    %95 = arith.subf %94, %86 : vector<8x128xf32>
    %cst_36 = arith.constant 0.000000e+00 : f32
    %96 = vector.broadcast %cst_36 : f32 to vector<8x128xf32>
    %97 = arith.maximumf %95, %96 : vector<8x128xf32>
    %98 = math.absf %95 : vector<8x128xf32>
    %cst_37 = arith.constant 0.000000e+00 : f32
    %99 = vector.broadcast %cst_37 : f32 to vector<8x128xf32>
    %100 = arith.subf %99, %98 : vector<8x128xf32>
    %101 = math.exp %100 : vector<8x128xf32>
    %cst_38 = arith.constant 1.000000e+00 : f32
    %102 = vector.broadcast %cst_38 : f32 to vector<8x128xf32>
    %103 = arith.addf %102, %101 : vector<8x128xf32>
    %104 = math.log %103 : vector<8x128xf32>
    %105 = arith.addf %97, %104 : vector<8x128xf32>
    %cst_39 = arith.constant 0.000000e+00 : f32
    %106 = vector.broadcast %cst_39 : f32 to vector<8x128xf32>
    %107 = arith.subf %106, %105 : vector<8x128xf32>
    %108 = arith.select %88, %93, %107 : vector<8x128xi1>, vector<8x128xf32>
    %109 = arith.select %85, %108, %82 : vector<8x128xi1>, vector<8x128xf32>
    %c0_40 = arith.constant 0 : index
    %c0_41 = arith.constant 0 : index
    %110 = vector.load %arg5[%c0_40, %c0_41] : memref<128x1024xf32, #tpu.memory_space<vmem>>, vector<128x1024xf32>
    %cst_42 = arith.constant dense<0.000000e+00> : vector<8x1024xf32>
    %111 = tpu.matmul %45, %110, %cst_42 {dimension_numbers = #tpu.dot_dimension_numbers<[1], [0], [0], [1], [0, 0, 1, 1], [], []>} : vector<8x128xf32>, vector<128x1024xf32>, vector<8x1024xf32> -> vector<8x1024xf32>
    %112 = vector.extract_strided_slice %109 {offsets = [0, 0], sizes = [1, 128], strides = [1, 1]} : vector<8x128xf32> to vector<1x128xf32>
    %113 = vector.extract_strided_slice %111 {offsets = [0, 0], sizes = [8, 128], strides = [1, 1]} : vector<8x1024xf32> to vector<8x128xf32>
    %114 = vector.broadcast %112 : vector<1x128xf32> to vector<8x128xf32>
    %115 = arith.subf %114, %113 : vector<8x128xf32>
    %116 = vector.extract_strided_slice %109 {offsets = [1, 0], sizes = [1, 128], strides = [1, 1]} : vector<8x128xf32> to vector<1x128xf32>
    %117 = vector.extract_strided_slice %111 {offsets = [0, 128], sizes = [8, 128], strides = [1, 1]} : vector<8x1024xf32> to vector<8x128xf32>
    %118 = vector.broadcast %116 : vector<1x128xf32> to vector<8x128xf32>
    %119 = arith.subf %118, %117 : vector<8x128xf32>
    %120 = vector.extract_strided_slice %109 {offsets = [2, 0], sizes = [1, 128], strides = [1, 1]} : vector<8x128xf32> to vector<1x128xf32>
    %121 = vector.extract_strided_slice %111 {offsets = [0, 256], sizes = [8, 128], strides = [1, 1]} : vector<8x1024xf32> to vector<8x128xf32>
    %122 = vector.broadcast %120 : vector<1x128xf32> to vector<8x128xf32>
    %123 = arith.subf %122, %121 : vector<8x128xf32>
    %124 = vector.extract_strided_slice %109 {offsets = [3, 0], sizes = [1, 128], strides = [1, 1]} : vector<8x128xf32> to vector<1x128xf32>
    %125 = vector.extract_strided_slice %111 {offsets = [0, 384], sizes = [8, 128], strides = [1, 1]} : vector<8x1024xf32> to vector<8x128xf32>
    %126 = vector.broadcast %124 : vector<1x128xf32> to vector<8x128xf32>
    %127 = arith.subf %126, %125 : vector<8x128xf32>
    %128 = vector.extract_strided_slice %109 {offsets = [4, 0], sizes = [1, 128], strides = [1, 1]} : vector<8x128xf32> to vector<1x128xf32>
    %129 = vector.extract_strided_slice %111 {offsets = [0, 512], sizes = [8, 128], strides = [1, 1]} : vector<8x1024xf32> to vector<8x128xf32>
    %130 = vector.broadcast %128 : vector<1x128xf32> to vector<8x128xf32>
    %131 = arith.subf %130, %129 : vector<8x128xf32>
    %132 = vector.extract_strided_slice %109 {offsets = [5, 0], sizes = [1, 128], strides = [1, 1]} : vector<8x128xf32> to vector<1x128xf32>
    %133 = vector.extract_strided_slice %111 {offsets = [0, 640], sizes = [8, 128], strides = [1, 1]} : vector<8x1024xf32> to vector<8x128xf32>
    %134 = vector.broadcast %132 : vector<1x128xf32> to vector<8x128xf32>
    %135 = arith.subf %134, %133 : vector<8x128xf32>
    %136 = vector.extract_strided_slice %109 {offsets = [6, 0], sizes = [1, 128], strides = [1, 1]} : vector<8x128xf32> to vector<1x128xf32>
    %137 = vector.extract_strided_slice %111 {offsets = [0, 768], sizes = [8, 128], strides = [1, 1]} : vector<8x1024xf32> to vector<8x128xf32>
    %138 = vector.broadcast %136 : vector<1x128xf32> to vector<8x128xf32>
    %139 = arith.subf %138, %137 : vector<8x128xf32>
    %140 = vector.extract_strided_slice %109 {offsets = [7, 0], sizes = [1, 128], strides = [1, 1]} : vector<8x128xf32> to vector<1x128xf32>
    %141 = vector.extract_strided_slice %111 {offsets = [0, 896], sizes = [8, 128], strides = [1, 1]} : vector<8x1024xf32> to vector<8x128xf32>
    %142 = vector.broadcast %140 : vector<1x128xf32> to vector<8x128xf32>
    %143 = arith.subf %142, %141 : vector<8x128xf32>
    %144 = arith.maximumf %115, %119 : vector<8x128xf32>
    %145 = arith.maximumf %144, %123 : vector<8x128xf32>
    %146 = arith.maximumf %145, %127 : vector<8x128xf32>
    %147 = arith.maximumf %146, %131 : vector<8x128xf32>
    %148 = arith.maximumf %147, %135 : vector<8x128xf32>
    %149 = arith.maximumf %148, %139 : vector<8x128xf32>
    %150 = arith.maximumf %149, %143 : vector<8x128xf32>
    %151 = arith.subf %115, %150 : vector<8x128xf32>
    %152 = math.exp %151 : vector<8x128xf32>
    %153 = arith.subf %119, %150 : vector<8x128xf32>
    %154 = math.exp %153 : vector<8x128xf32>
    %155 = arith.subf %123, %150 : vector<8x128xf32>
    %156 = math.exp %155 : vector<8x128xf32>
    %157 = arith.subf %127, %150 : vector<8x128xf32>
    %158 = math.exp %157 : vector<8x128xf32>
    %159 = arith.subf %131, %150 : vector<8x128xf32>
    %160 = math.exp %159 : vector<8x128xf32>
    %161 = arith.subf %135, %150 : vector<8x128xf32>
    %162 = math.exp %161 : vector<8x128xf32>
    %163 = arith.subf %139, %150 : vector<8x128xf32>
    %164 = math.exp %163 : vector<8x128xf32>
    %165 = arith.subf %143, %150 : vector<8x128xf32>
    %166 = math.exp %165 : vector<8x128xf32>
    %cst_43 = arith.constant 0.000000e+00 : f32
    %167 = vector.broadcast %cst_43 : f32 to vector<8x128xf32>
    %168 = arith.addf %167, %152 : vector<8x128xf32>
    %169 = vector.extract_strided_slice %111 {offsets = [0, 0], sizes = [8, 128], strides = [1, 1]} : vector<8x1024xf32> to vector<8x128xf32>
    %170 = arith.addf %169, %150 : vector<8x128xf32>
    %171 = math.exp %170 : vector<8x128xf32>
    %172 = arith.mulf %168, %171 : vector<8x128xf32>
    %c0_44 = arith.constant 0 : index
    %c0_45 = arith.constant 0 : index
    %173 = vector.load %arg6[%c0_44, %c0_45] : memref<8x1024xf32, #tpu.memory_space<vmem>>, vector<8x128xf32>
    tpu.vector_store %arg6[%c0_44, %c0_45], %172 {strides = array<i32>} : memref<8x1024xf32, #tpu.memory_space<vmem>>, vector<8x128xf32>,
    %174 = arith.addf %168, %154 : vector<8x128xf32>
    %175 = vector.extract_strided_slice %111 {offsets = [0, 128], sizes = [8, 128], strides = [1, 1]} : vector<8x1024xf32> to vector<8x128xf32>
    %176 = arith.addf %175, %150 : vector<8x128xf32>
    %177 = math.exp %176 : vector<8x128xf32>
    %178 = arith.mulf %174, %177 : vector<8x128xf32>
    %c0_46 = arith.constant 0 : index
    %c128 = arith.constant 128 : index
    %179 = vector.load %arg6[%c0_46, %c128] : memref<8x1024xf32, #tpu.memory_space<vmem>>, vector<8x128xf32>
    tpu.vector_store %arg6[%c0_46, %c128], %178 {strides = array<i32>} : memref<8x1024xf32, #tpu.memory_space<vmem>>, vector<8x128xf32>,
    %180 = arith.addf %174, %156 : vector<8x128xf32>
    %181 = vector.extract_strided_slice %111 {offsets = [0, 256], sizes = [8, 128], strides = [1, 1]} : vector<8x1024xf32> to vector<8x128xf32>
    %182 = arith.addf %181, %150 : vector<8x128xf32>
    %183 = math.exp %182 : vector<8x128xf32>
    %184 = arith.mulf %180, %183 : vector<8x128xf32>
    %c0_47 = arith.constant 0 : index
    %c256 = arith.constant 256 : index
    %185 = vector.load %arg6[%c0_47, %c256] : memref<8x1024xf32, #tpu.memory_space<vmem>>, vector<8x128xf32>
    tpu.vector_store %arg6[%c0_47, %c256], %184 {strides = array<i32>} : memref<8x1024xf32, #tpu.memory_space<vmem>>, vector<8x128xf32>,
    %186 = arith.addf %180, %158 : vector<8x128xf32>
    %187 = vector.extract_strided_slice %111 {offsets = [0, 384], sizes = [8, 128], strides = [1, 1]} : vector<8x1024xf32> to vector<8x128xf32>
    %188 = arith.addf %187, %150 : vector<8x128xf32>
    %189 = math.exp %188 : vector<8x128xf32>
    %190 = arith.mulf %186, %189 : vector<8x128xf32>
    %c0_48 = arith.constant 0 : index
    %c384 = arith.constant 384 : index
    %191 = vector.load %arg6[%c0_48, %c384] : memref<8x1024xf32, #tpu.memory_space<vmem>>, vector<8x128xf32>
    tpu.vector_store %arg6[%c0_48, %c384], %190 {strides = array<i32>} : memref<8x1024xf32, #tpu.memory_space<vmem>>, vector<8x128xf32>,
    %192 = arith.addf %186, %160 : vector<8x128xf32>
    %193 = vector.extract_strided_slice %111 {offsets = [0, 512], sizes = [8, 128], strides = [1, 1]} : vector<8x1024xf32> to vector<8x128xf32>
    %194 = arith.addf %193, %150 : vector<8x128xf32>
    %195 = math.exp %194 : vector<8x128xf32>
    %196 = arith.mulf %192, %195 : vector<8x128xf32>
    %c0_49 = arith.constant 0 : index
    %c512 = arith.constant 512 : index
    %197 = vector.load %arg6[%c0_49, %c512] : memref<8x1024xf32, #tpu.memory_space<vmem>>, vector<8x128xf32>
    tpu.vector_store %arg6[%c0_49, %c512], %196 {strides = array<i32>} : memref<8x1024xf32, #tpu.memory_space<vmem>>, vector<8x128xf32>,
    %198 = arith.addf %192, %162 : vector<8x128xf32>
    %199 = vector.extract_strided_slice %111 {offsets = [0, 640], sizes = [8, 128], strides = [1, 1]} : vector<8x1024xf32> to vector<8x128xf32>
    %200 = arith.addf %199, %150 : vector<8x128xf32>
    %201 = math.exp %200 : vector<8x128xf32>
    %202 = arith.mulf %198, %201 : vector<8x128xf32>
    %c0_50 = arith.constant 0 : index
    %c640 = arith.constant 640 : index
    %203 = vector.load %arg6[%c0_50, %c640] : memref<8x1024xf32, #tpu.memory_space<vmem>>, vector<8x128xf32>
    tpu.vector_store %arg6[%c0_50, %c640], %202 {strides = array<i32>} : memref<8x1024xf32, #tpu.memory_space<vmem>>, vector<8x128xf32>,
    %204 = arith.addf %198, %164 : vector<8x128xf32>
    %205 = vector.extract_strided_slice %111 {offsets = [0, 768], sizes = [8, 128], strides = [1, 1]} : vector<8x1024xf32> to vector<8x128xf32>
    %206 = arith.addf %205, %150 : vector<8x128xf32>
    %207 = math.exp %206 : vector<8x128xf32>
    %208 = arith.mulf %204, %207 : vector<8x128xf32>
    %c0_51 = arith.constant 0 : index
    %c768 = arith.constant 768 : index
    %209 = vector.load %arg6[%c0_51, %c768] : memref<8x1024xf32, #tpu.memory_space<vmem>>, vector<8x128xf32>
    tpu.vector_store %arg6[%c0_51, %c768], %208 {strides = array<i32>} : memref<8x1024xf32, #tpu.memory_space<vmem>>, vector<8x128xf32>,
    %210 = arith.addf %204, %166 : vector<8x128xf32>
    %211 = vector.extract_strided_slice %111 {offsets = [0, 896], sizes = [8, 128], strides = [1, 1]} : vector<8x1024xf32> to vector<8x128xf32>
    %212 = arith.addf %211, %150 : vector<8x128xf32>
    %213 = math.exp %212 : vector<8x128xf32>
    %214 = arith.mulf %210, %213 : vector<8x128xf32>
    %c0_52 = arith.constant 0 : index
    %c896 = arith.constant 896 : index
    %215 = vector.load %arg6[%c0_52, %c896] : memref<8x1024xf32, #tpu.memory_space<vmem>>, vector<8x128xf32>
    tpu.vector_store %arg6[%c0_52, %c896], %214 {strides = array<i32>} : memref<8x1024xf32, #tpu.memory_space<vmem>>, vector<8x128xf32>,
    return
  }
  func.func @transform_0(%arg0: i32) -> (i32, i32) {
    %c0_i32 = arith.constant 0 : i32
    %c0_i32_0 = arith.constant 0 : i32
    %c0_i32_1 = arith.constant 0 : i32
    return %c0_i32, %c0_i32_0 : i32, i32
  }
  func.func @transform_1(%arg0: i32) -> (i32, i32) {
    %c0_i32 = arith.constant 0 : i32
    %c0_i32_0 = arith.constant 0 : i32
    %c0_i32_1 = arith.constant 0 : i32
    return %c0_i32, %c0_i32_0 : i32, i32
  }
  func.func @transform_2(%arg0: i32) -> (i32, i32) {
    %c0_i32 = arith.constant 0 : i32
    %c0_i32_0 = arith.constant 0 : i32
    %c0_i32_1 = arith.constant 0 : i32
    return %c0_i32, %c0_i32_0 : i32, i32
  }
  func.func @transform_3(%arg0: i32) -> (i32, i32) {
    %c0_i32 = arith.constant 0 : i32
    %c0_i32_0 = arith.constant 0 : i32
    %c0_i32_1 = arith.constant 0 : i32
    return %c0_i32, %c0_i32_0 : i32, i32
  }
  func.func @transform_4(%arg0: i32) -> (i32, i32) {
    %c0_i32 = arith.constant 0 : i32
    %c0_i32_0 = arith.constant 0 : i32
    %c0_i32_1 = arith.constant 0 : i32
    return %c0_i32, %c0_i32_0 : i32, i32
  }
  func.func @transform_5(%arg0: i32) -> (i32, i32) {
    %c0_i32 = arith.constant 0 : i32
    %c0_i32_0 = arith.constant 0 : i32
    %c0_i32_1 = arith.constant 0 : i32
    return %c0_i32, %c0_i32_0 : i32, i32
  }
}

</mosaic_0001>

<llo_original>
// kernel: tpu_custom_call.1
$region0: #{tpu_custom_call.1}
  #allocation0 [shape = 'u32[]', space=smem, size = 0x4, offset = 0x4, fixed_abs, tag = 'smem constant byte address 0x4 - core index']
  #allocation1 [shape = 'u32[144,128]{1,0:T(1,128)}', space=vmem, size = 0x12000, scoped, tag = 'internal scratch']
  %s0 = inlined_call_operand.hbm [shape: f32[8,128], index: 0, kind: input, shape index: {}]
  %s1 = inlined_call_operand.hbm [shape: f32[8,128], index: 1, kind: input, shape index: {}]
  %s2 = inlined_call_operand.hbm [shape: f32[128,384], index: 2, kind: input, shape index: {}]
  %s3 = inlined_call_operand.vmem [shape: f32[1,384], index: 3, kind: input, shape index: {}]
  %s4 = inlined_call_operand.hbm [shape: f32[128,1024], index: 4, kind: input, shape index: {}]
  %s5 = inlined_call_operand.hbm [shape: f32[8,1024], index: 5, kind: output, shape index: {}]
  %s6 = sld [smem:[#allocation0]]
  $region46: #{tpu_custom_call.1} parent=0
    _
  %s8 = ssub.s32 1, %s6
  %s9 = scalar_select 0, %s8, %s6
  $region1: #{tpu_custom_call.1} parent=0
    #allocation2 [shape = 'u8[4096]{0}', space=vmem, size = 0x1000, scoped, tag = 'input window, operand 0, single buffered']
    #allocation3 [shape = 's32[1]{0}', space=sflag, size = 0x4, scoped, tag = 'scoped memory for tpu_custom_call.1']
    #allocation4 [shape = 's32[1]{0}', space=sflag, size = 0x4, scoped, tag = 'scoped memory for tpu_custom_call.1']
    #allocation5 [shape = 'u8[4096]{0}', space=vmem, size = 0x1000, scoped, tag = 'input window, operand 1, single buffered']
    #allocation6 [shape = 's32[1]{0}', space=sflag, size = 0x4, scoped, tag = 'scoped memory for tpu_custom_call.1']
    #allocation7 [shape = 'u8[196608]{0}', space=vmem, size = 0x30000, scoped, tag = 'input window, operand 2, single buffered']
    #allocation8 [shape = 'u8[524288]{0}', space=vmem, size = 0x80000, scoped, tag = 'input window, operand 4, single buffered']
    #allocation9 [shape = 's32[1]{0}', space=sflag, size = 0x4, scoped, tag = 'scoped memory for tpu_custom_call.1']
    #allocation10 [shape = 'u8[32768]{0}', space=vmem, size = 0x8000, scoped, tag = 'output window, operand 0, single buffered']
    %10 = vsyncpa [#allocation3], 0
    %11 = vsyncpa [#allocation6], 0
    %12 = vsyncpa [#allocation9], 0
    %13 = vsyncpa [#allocation4], 0
    // Predicated region
    $region2: #{tpu_custom_call.1} parent=1 // pred_check
      _
    $region3: #{tpu_custom_call.1} parent=1 // pred_check_branch
      %15 = sbr.rel (0) target = $region5
    $region4: #{tpu_custom_call.1} parent=1 // pred_region
      %s17 = ssub.s32 128, 128
      %18 = vsyncadd [#allocation3], %s17
      %s20 = sshll.u32 [#allocation2], 4
      %s21 = int_to_ptr.vmem [resolvable:$true] %s20
      %23 = dma.hbm_to_vmem [thread:$0]  %s0, 128, %s21, [#allocation3]
    $region5: #{tpu_custom_call.1} parent=1 // pred_fallthru
      _
    // Predicated region
    $region6: #{tpu_custom_call.1} parent=1 // pred_check
      _
    $region7: #{tpu_custom_call.1} parent=1 // pred_check_branch
      %25 = sbr.rel (0) target = $region9
    $region8: #{tpu_custom_call.1} parent=1 // pred_region
      %s27 = ssub.s32 128, 128
      %28 = vsyncadd [#allocation6], %s27
      %s30 = sshll.u32 [#allocation5], 4
      %s31 = int_to_ptr.vmem [resolvable:$true] %s30
      %33 = dma.hbm_to_vmem [thread:$0]  %s1, 128, %s31, [#allocation6]
    $region9: #{tpu_custom_call.1} parent=1 // pred_fallthru
      _
    // Predicated region
    $region10: #{tpu_custom_call.1} parent=1 // pred_check
      _
    $region11: #{tpu_custom_call.1} parent=1 // pred_check_branch
      %35 = sbr.rel (0) target = $region13
    $region12: #{tpu_custom_call.1} parent=1 // pred_region
      %s37 = ssub.s32 6144, 6144
      %38 = vsyncadd [#allocation6], %s37
      %s39 = sshll.u32 [#allocation7], 4
      %s40 = int_to_ptr.vmem [resolvable:$true] %s39
      %45 = dma.hbm_to_vmem [thread:$0]  %s2, 6144, %s40, [#allocation6], 384, 384, 24
    $region13: #{tpu_custom_call.1} parent=1 // pred_fallthru
      _
    // Predicated region
    $region14: #{tpu_custom_call.1} parent=1 // pred_check
      _
    $region15: #{tpu_custom_call.1} parent=1 // pred_check_branch
      %47 = sbr.rel (0) target = $region17
    $region16: #{tpu_custom_call.1} parent=1 // pred_region
      _
    $region17: #{tpu_custom_call.1} parent=1 // pred_fallthru
      _
    // Predicated region
    $region18: #{tpu_custom_call.1} parent=1 // pred_check
      _
    $region19: #{tpu_custom_call.1} parent=1 // pred_check_branch
      %49 = sbr.rel (0) target = $region21
    $region20: #{tpu_custom_call.1} parent=1 // pred_region
      %s51 = ssub.s32 16384, 16384
      %52 = vsyncadd [#allocation9], %s51
      %s53 = sshll.u32 [#allocation8], 4
      %s54 = int_to_ptr.vmem [resolvable:$true] %s53
      %59 = dma.hbm_to_vmem [thread:$0]  %s4, 16384, %s54, [#allocation9], 1024, 1024, 64
    $region21: #{tpu_custom_call.1} parent=1 // pred_fallthru
      _
    // Predicated region
    $region22: #{tpu_custom_call.1} parent=1 // pred_check
      _
    $region23: #{tpu_custom_call.1} parent=1 // pred_check_branch
      %61 = sbr.rel (0) target = $region25
    $region24: #{tpu_custom_call.1} parent=1 // pred_region
      %62 = dma.done [#allocation3], 128
    $region25: #{tpu_custom_call.1} parent=1 // pred_fallthru
      _
    // Predicated region
    $region26: #{tpu_custom_call.1} parent=1 // pred_check
      _
    $region27: #{tpu_custom_call.1} parent=1 // pred_check_branch
      %64 = sbr.rel (0) target = $region29
    $region28: #{tpu_custom_call.1} parent=1 // pred_region
      %65 = dma.done [#allocation6], 128
    $region29: #{tpu_custom_call.1} parent=1 // pred_fallthru
      _
    // Predicated region
    $region30: #{tpu_custom_call.1} parent=1 // pred_check
      _
    $region31: #{tpu_custom_call.1} parent=1 // pred_check_branch
      %67 = sbr.rel (0) target = $region33
    $region32: #{tpu_custom_call.1} parent=1 // pred_region
      %68 = dma.done [#allocation6], 6144
    $region33: #{tpu_custom_call.1} parent=1 // pred_fallthru
      _
    // Predicated region
    $region34: #{tpu_custom_call.1} parent=1 // pred_check
      _
    $region35: #{tpu_custom_call.1} parent=1 // pred_check_branch
      %70 = sbr.rel (0) target = $region37
    $region36: #{tpu_custom_call.1} parent=1 // pred_region
      %71 = dma.done [#allocation9], 16384
    $region37: #{tpu_custom_call.1} parent=1 // pred_fallthru
      _
    %v72 = vld [vmem:[#allocation2] sm:$0xff]
    %v73 = vld [vmem:[#allocation7] sm:$0xff]
    %v74 = vld [vmem:[#allocation7 + $0x8] sm:$0xff]
    %v75 = vld [vmem:[#allocation7 + $0x10] sm:$0xff]
    %v76 = vld [vmem:[#allocation7 + $0x18] sm:$0xff]
    %v77 = vld [vmem:[#allocation7 + $0x20] sm:$0xff]
    %v78 = vld [vmem:[#allocation7 + $0x28] sm:$0xff]
    %v79 = vld [vmem:[#allocation7 + $0x30] sm:$0xff]
    %v80 = vld [vmem:[#allocation7 + $0x38] sm:$0xff]
    %v81 = vld [vmem:[#allocation7 + $0x40] sm:$0xff]
    %v82 = vld [vmem:[#allocation7 + $0x48] sm:$0xff]
    %v83 = vld [vmem:[#allocation7 + $0x50] sm:$0xff]
    %v84 = vld [vmem:[#allocation7 + $0x58] sm:$0xff]
    %v85 = vld [vmem:[#allocation7 + $0x60] sm:$0xff]
    %v86 = vld [vmem:[#allocation7 + $0x68] sm:$0xff]
    %v87 = vld [vmem:[#allocation7 + $0x70] sm:$0xff]
    %v88 = vld [vmem:[#allocation7 + $0x78] sm:$0xff]
    %v89 = vld [vmem:[#allocation7 + $0x80] sm:$0xff]
    %v90 = vld [vmem:[#allocation7 + $0x88] sm:$0xff]
    %v91 = vld [vmem:[#allocation7 + $0x90] sm:$0xff]
    %v92 = vld [vmem:[#allocation7 + $0x98] sm:$0xff]
    %v93 = vld [vmem:[#allocation7 + $0xa0] sm:$0xff]
    %v94 = vld [vmem:[#allocation7 + $0xa8] sm:$0xff]
    %v95 = vld [vmem:[#allocation7 + $0xb0] sm:$0xff]
    %v96 = vld [vmem:[#allocation7 + $0xb8] sm:$0xff]
    %v97 = vld [vmem:[#allocation7 + $0xc0] sm:$0xff]
    %v98 = vld [vmem:[#allocation7 + $0xc8] sm:$0xff]
    %v99 = vld [vmem:[#allocation7 + $0xd0] sm:$0xff]
    %v100 = vld [vmem:[#allocation7 + $0xd8] sm:$0xff]
    %v101 = vld [vmem:[#allocation7 + $0xe0] sm:$0xff]
    %v102 = vld [vmem:[#allocation7 + $0xe8] sm:$0xff]
    %v103 = vld [vmem:[#allocation7 + $0xf0] sm:$0xff]
    %v104 = vld [vmem:[#allocation7 + $0xf8] sm:$0xff]
    %v105 = vld [vmem:[#allocation7 + $0x100] sm:$0xff]
    %v106 = vld [vmem:[#allocation7 + $0x108] sm:$0xff]
    %v107 = vld [vmem:[#allocation7 + $0x110] sm:$0xff]
    %v108 = vld [vmem:[#allocation7 + $0x118] sm:$0xff]
    %v109 = vld [vmem:[#allocation7 + $0x120] sm:$0xff]
    %v110 = vld [vmem:[#allocation7 + $0x128] sm:$0xff]
    %v111 = vld [vmem:[#allocation7 + $0x130] sm:$0xff]
    %v112 = vld [vmem:[#allocation7 + $0x138] sm:$0xff]
    %v113 = vld [vmem:[#allocation7 + $0x140] sm:$0xff]
    %v114 = vld [vmem:[#allocation7 + $0x148] sm:$0xff]
    %v115 = vld [vmem:[#allocation7 + $0x150] sm:$0xff]
    %v116 = vld [vmem:[#allocation7 + $0x158] sm:$0xff]
    %v117 = vld [vmem:[#allocation7 + $0x160] sm:$0xff]
    %v118 = vld [vmem:[#allocation7 + $0x168] sm:$0xff]
    %v119 = vld [vmem:[#allocation7 + $0x170] sm:$0xff]
    %v120 = vld [vmem:[#allocation7 + $0x178] sm:$0xff]
    %v121 = vld [vmem:[%s3] sm:$0x7]
    %v123 = vlaneseq
    %v124 = vshrl.u32 %v123, 7
    %v125 = vsub.s32 0, %v124
    %v126 = vrot.slane %v121, %v125
    %v127 = vlaneseq
    %v128 = vshrl.u32 %v127, 7
    %v129 = vsub.s32 1, %v128
    %v130 = vrot.slane %v121, %v129
    %v131 = vlaneseq
    %v132 = vshrl.u32 %v131, 7
    %v133 = vsub.s32 2, %v132
    %v134 = vrot.slane %v121, %v133
    %138 = vmatprep.subr.mxu0 %v74
    %139 = vmatpush1.msra.mxu0 %v73
    %140 = vmatprep.subr.mxu0 %v77
    %141 = vmatpush1.msra.mxu0 %v76
    %142 = vmatprep.subr.mxu0 %v80
    %143 = vmatpush1.msra.mxu0 %v79
    %144 = vmatprep.subr.mxu0 %v83
    %145 = vmatpush1.msra.mxu0 %v82
    %146 = vmatprep.subr.mxu0 %v86
    %147 = vmatpush1.msra.mxu0 %v85
    %148 = vmatprep.subr.mxu0 %v89
    %149 = vmatpush1.msra.mxu0 %v88
    %150 = vmatprep.subr.mxu0 %v92
    %151 = vmatpush1.msra.mxu0 %v91
    %152 = vmatprep.subr.mxu0 %v95
    %153 = vmatpush1.msra.mxu0 %v94
    %154 = vmatprep.subr.mxu0 %v98
    %155 = vmatpush1.msra.mxu0 %v97
    %156 = vmatprep.subr.mxu0 %v101
    %157 = vmatpush1.msra.mxu0 %v100
    %158 = vmatprep.subr.mxu0 %v104
    %159 = vmatpush1.msra.mxu0 %v103
    %160 = vmatprep.subr.mxu0 %v107
    %161 = vmatpush1.msra.mxu0 %v106
    %162 = vmatprep.subr.mxu0 %v110
    %163 = vmatpush1.msra.mxu0 %v109
    %164 = vmatprep.subr.mxu0 %v113
    %165 = vmatpush1.msra.mxu0 %v112
    %166 = vmatprep.subr.mxu0 %v116
    %167 = vmatpush1.msra.mxu0 %v115
    %168 = vmatprep.subr.mxu0 %v119
    %169 = vmatpush1.msra.mxu0 %v118
    %170 = vmatprep.subr.mxu0 0.0
    %171 = vmatpush1.msra.mxu0 0.0
    %172 = vmatprep.subr.mxu0 0.0
    %173 = vmatpush1.msra.mxu0 0.0
    %174 = vmatprep.subr.mxu0 0.0
    %175 = vmatpush1.msra.mxu0 0.0
    %176 = vmatprep.subr.mxu0 0.0
    %177 = vmatpush1.msra.mxu0 0.0
    %178 = vmatprep.subr.mxu0 0.0
    %179 = vmatpush1.msra.mxu0 0.0
    %180 = vmatprep.subr.mxu0 0.0
    %181 = vmatpush1.msra.mxu0 0.0
    %182 = vmatprep.subr.mxu0 0.0
    %183 = vmatpush1.msra.mxu0 0.0
    %184 = vmatprep.subr.mxu0 0.0
    %185 = vmatpush1.msra.mxu0 0.0
    %186 = vmatprep.subr.mxu0 0.0
    %187 = vmatpush1.msra.mxu0 0.0
    %188 = vmatprep.subr.mxu0 0.0
    %189 = vmatpush1.msra.mxu0 0.0
    %190 = vmatprep.subr.mxu0 0.0
    %191 = vmatpush1.msra.mxu0 0.0
    %192 = vmatprep.subr.mxu0 0.0
    %193 = vmatpush1.msra.mxu0 0.0
    %194 = vmatprep.subr.mxu0 0.0
    %195 = vmatpush1.msra.mxu0 0.0
    %196 = vmatprep.subr.mxu0 0.0
    %197 = vmatpush1.msra.mxu0 0.0
    %198 = vmatprep.subr.mxu0 0.0
    %199 = vmatpush1.msra.mxu0 0.0
    %200 = vmatprep.subr.mxu0 0.0
    %201 = vmatpush1.msra.mxu0 0.0
    %202 = vmatprep.mubr.f32.mxu0 0.0
    %203 = vmatmul.mubr.f32.gmra.mrb[0].mxu0 %v72
    %v204 = vpop.f32.mrb[0].mxu0
    %v205 = vadd.f32 %v126, %v204
    %v206 = vpop.f32.mrb[0].mxu0
    %v207 = vadd.f32 %v130, %v206
    %208 = vdwg.mxu0
    %209 = vmatprep.subr.mxu0 0.0
    %210 = vmatpush1.msra.mxu0 %v75
    %211 = vmatprep.subr.mxu0 0.0
    %212 = vmatpush1.msra.mxu0 %v78
    %213 = vmatprep.subr.mxu0 0.0
    %214 = vmatpush1.msra.mxu0 %v81
    %215 = vmatprep.subr.mxu0 0.0
    %216 = vmatpush1.msra.mxu0 %v84
    %217 = vmatprep.subr.mxu0 0.0
    %218 = vmatpush1.msra.mxu0 %v87
    %219 = vmatprep.subr.mxu0 0.0
    %220 = vmatpush1.msra.mxu0 %v90
    %221 = vmatprep.subr.mxu0 0.0
    %222 = vmatpush1.msra.mxu0 %v93
    %223 = vmatprep.subr.mxu0 0.0
    %224 = vmatpush1.msra.mxu0 %v96
    %225 = vmatprep.subr.mxu0 0.0
    %226 = vmatpush1.msra.mxu0 %v99
    %227 = vmatprep.subr.mxu0 0.0
    %228 = vmatpush1.msra.mxu0 %v102
    %229 = vmatprep.subr.mxu0 0.0
    %230 = vmatpush1.msra.mxu0 %v105
    %231 = vmatprep.subr.mxu0 0.0
    %232 = vmatpush1.msra.mxu0 %v108
    %233 = vmatprep.subr.mxu0 0.0
    %234 = vmatpush1.msra.mxu0 %v111
    %235 = vmatprep.subr.mxu0 0.0
    %236 = vmatpush1.msra.mxu0 %v114
    %237 = vmatprep.subr.mxu0 0.0
    %238 = vmatpush1.msra.mxu0 %v117
    %239 = vmatprep.subr.mxu0 0.0
    %240 = vmatpush1.msra.mxu0 %v120
    %241 = vmatprep.subr.mxu0 0.0
    %242 = vmatpush1.msra.mxu0 0.0
    %243 = vmatprep.subr.mxu0 0.0
    %244 = vmatpush1.msra.mxu0 0.0
    %245 = vmatprep.subr.mxu0 0.0
    %246 = vmatpush1.msra.mxu0 0.0
    %247 = vmatprep.subr.mxu0 0.0
    %248 = vmatpush1.msra.mxu0 0.0
    %249 = vmatprep.subr.mxu0 0.0
    %250 = vmatpush1.msra.mxu0 0.0
    %251 = vmatprep.subr.mxu0 0.0
    %252 = vmatpush1.msra.mxu0 0.0
    %253 = vmatprep.subr.mxu0 0.0
    %254 = vmatpush1.msra.mxu0 0.0
    %255 = vmatprep.subr.mxu0 0.0
    %256 = vmatpush1.msra.mxu0 0.0
    %257 = vmatprep.subr.mxu0 0.0
    %258 = vmatpush1.msra.mxu0 0.0
    %259 = vmatprep.subr.mxu0 0.0
    %260 = vmatpush1.msra.mxu0 0.0
    %261 = vmatprep.subr.mxu0 0.0
    %262 = vmatpush1.msra.mxu0 0.0
    %263 = vmatprep.subr.mxu0 0.0
    %264 = vmatpush1.msra.mxu0 0.0
    %265 = vmatprep.subr.mxu0 0.0
    %266 = vmatpush1.msra.mxu0 0.0
    %267 = vmatprep.subr.mxu0 0.0
    %268 = vmatpush1.msra.mxu0 0.0
    %269 = vmatprep.subr.mxu0 0.0
    %270 = vmatpush1.msra.mxu0 0.0
    %271 = vmatprep.subr.mxu0 0.0
    %272 = vmatpush1.msra.mxu0 0.0
    %273 = vmatprep.mubr.f32.mxu0 0.0
    %274 = vmatmul.mubr.f32.gmra.mrb[0].mxu0 %v72
    %v275 = vpop.f32.mrb[0].mxu0
    %v276 = vadd.f32 %v134, %v275
    %v277 = vpop.f32.mrb[0].mxu0
    %278 = vdwg.mxu0
    %v279 = vsub.f32 0.0, %v205
    %v280 = vmax.f32 %v279, 0.0
    %v281 = vand.u32 2147483647, %v279
    %v282 = vsub.f32 0.0, %v281
    %v283 = vmul.f32 %v282, 1.442695
    %v284 = vpow.pop %v283
    %v285 = vadd.f32 %v284, 1.0
    %v286 = vlog2.pop %v285
    %v287 = vmul.f32 %v286, 0.6931472
    %v288 = vadd.f32 %v280, %v287
    %v289 = vsub.f32 0.0, %v207
    %v290 = vmax.f32 %v289, 0.0
    %v291 = vand.u32 2147483647, %v289
    %v292 = vsub.f32 0.0, %v291
    %v293 = vmul.f32 %v292, 1.442695
    %v294 = vpow.pop %v293
    %v295 = vadd.f32 %v294, 1.0
    %v296 = vlog2.pop %v295
    %v297 = vmul.f32 %v296, 0.6931472
    %v298 = vadd.f32 %v290, %v297
    %v299 = vsub.f32 %v288, %v298
    %v300 = vmax.f32 %v299, 0.0
    %v301 = vand.u32 2147483647, %v299
    %v302 = vsub.f32 0.0, %v301
    %v303 = vmul.f32 %v302, 1.442695
    %v304 = vpow.pop %v303
    %v305 = vadd.f32 %v304, 1.0
    %v306 = vlog2.pop %v305
    %v307 = vmul.f32 %v306, 0.6931472
    %v308 = vadd.f32 %v300, %v307
    %v309 = vsub.f32 0.0, %v308
    %v310 = vsub.f32 0.0, %v299
    %v311 = vmax.f32 %v310, 0.0
    %v312 = vand.u32 2147483647, %v310
    %v313 = vsub.f32 0.0, %v312
    %v314 = vmul.f32 %v313, 1.442695
    %v315 = vpow.pop %v314
    %v316 = vadd.f32 %v315, 1.0
    %v317 = vlog2.pop %v316
    %v318 = vmul.f32 %v317, 0.6931472
    %v319 = vadd.f32 %v311, %v318
    %v320 = vsub.f32 0.0, %v319
    %vm321 = vcmp.ge.f32.partialorder %v276, 0.0
    %v322 = vmax.f32 %v276, 0.0
    %v323 = vadd.f32 %v322, 0.5
    %v324 = vlog2.pop %v323
    %v325 = vmul.f32 %v324, 0.6931472
    %v326 = vsub.f32 0.0, %v276
    %v327 = vmax.f32 %v326, 0.0
    %v328 = vand.u32 2147483647, %v326
    %v329 = vsub.f32 0.0, %v328
    %v330 = vmul.f32 %v329, 1.442695
    %v331 = vpow.pop %v330
    %v332 = vadd.f32 %v331, 1.0
    %v333 = vlog2.pop %v332
    %v334 = vmul.f32 %v333, 0.6931472
    %v335 = vadd.f32 %v327, %v334
    %v336 = vsub.f32 0.0, %v335
    %v337 = vsel %vm321, %v325, %v336
    %v338 = vadd.f32 %v320, %v337
    %v339 = vlaneseq
    %v340 = vand.u32 %v339, 127
    %vm341 = vcmp.lt.s32.totalorder %v340, 8
    %v342 = vld [vmem:[#allocation5] sm:$0xff]
    %vm343 = vcmp.ge.f32.partialorder %v342, 0.0
    %v344 = vmax.f32 %v342, 0.0
    %v345 = vadd.f32 %v344, 0.5
    %v346 = vlog2.pop %v345
    %v347 = vmul.f32 %v346, 0.6931472
    %v348 = vsub.f32 0.0, %v342
    %v349 = vmax.f32 %v348, 0.0
    %v350 = vand.u32 2147483647, %v348
    %v351 = vsub.f32 0.0, %v350
    %v352 = vmul.f32 %v351, 1.442695
    %v353 = vpow.pop %v352
    %v354 = vadd.f32 %v353, 1.0
    %v355 = vlog2.pop %v354
    %v356 = vmul.f32 %v355, 0.6931472
    %v357 = vadd.f32 %v349, %v356
    %v358 = vsub.f32 0.0, %v357
    %v359 = vsel %vm343, %v347, %v358
    %v360 = vsel %vm341, %v359, %v338
    %v361 = vld [vmem:[#allocation8] sm:$0xff]
    %v362 = vld [vmem:[#allocation8 + $0x8] sm:$0xff]
    %v363 = vld [vmem:[#allocation8 + $0x10] sm:$0xff]
    %v364 = vld [vmem:[#allocation8 + $0x18] sm:$0xff]
    %v365 = vld [vmem:[#allocation8 + $0x20] sm:$0xff]
    %v366 = vld [vmem:[#allocation8 + $0x28] sm:$0xff]
    %v367 = vld [vmem:[#allocation8 + $0x30] sm:$0xff]
    %v368 = vld [vmem:[#allocation8 + $0x38] sm:$0xff]
    %v369 = vld [vmem:[#allocation8 + $0x40] sm:$0xff]
    %v370 = vld [vmem:[#allocation8 + $0x48] sm:$0xff]
    %v371 = vld [vmem:[#allocation8 + $0x50] sm:$0xff]
    %v372 = vld [vmem:[#allocation8 + $0x58] sm:$0xff]
    %v373 = vld [vmem:[#allocation8 + $0x60] sm:$0xff]
    %v374 = vld [vmem:[#allocation8 + $0x68] sm:$0xff]
    %v375 = vld [vmem:[#allocation8 + $0x70] sm:$0xff]
    %v376 = vld [vmem:[#allocation8 + $0x78] sm:$0xff]
    %v377 = vld [vmem:[#allocation8 + $0x80] sm:$0xff]
    %v378 = vld [vmem:[#allocation8 + $0x88] sm:$0xff]
    %v379 = vld [vmem:[#allocation8 + $0x90] sm:$0xff]
    %v380 = vld [vmem:[#allocation8 + $0x98] sm:$0xff]
    %v381 = vld [vmem:[#allocation8 + $0xa0] sm:$0xff]
    %v382 = vld [vmem:[#allocation8 + $0xa8] sm:$0xff]
    %v383 = vld [vmem:[#allocation8 + $0xb0] sm:$0xff]
    %v384 = vld [vmem:[#allocation8 + $0xb8] sm:$0xff]
    %v385 = vld [vmem:[#allocation8 + $0xc0] sm:$0xff]
    %v386 = vld [vmem:[#allocation8 + $0xc8] sm:$0xff]
    %v387 = vld [vmem:[#allocation8 + $0xd0] sm:$0xff]
    %v388 = vld [vmem:[#allocation8 + $0xd8] sm:$0xff]
    %v389 = vld [vmem:[#allocation8 + $0xe0] sm:$0xff]
    %v390 = vld [vmem:[#allocation8 + $0xe8] sm:$0xff]
    %v391 = vld [vmem:[#allocation8 + $0xf0] sm:$0xff]
    %v392 = vld [vmem:[#allocation8 + $0xf8] sm:$0xff]
    %v393 = vld [vmem:[#allocation8 + $0x100] sm:$0xff]
    %v394 = vld [vmem:[#allocation8 + $0x108] sm:$0xff]
    %v395 = vld [vmem:[#allocation8 + $0x110] sm:$0xff]
    %v396 = vld [vmem:[#allocation8 + $0x118] sm:$0xff]
    %v397 = vld [vmem:[#allocation8 + $0x120] sm:$0xff]
    %v398 = vld [vmem:[#allocation8 + $0x128] sm:$0xff]
    %v399 = vld [vmem:[#allocation8 + $0x130] sm:$0xff]
    %v400 = vld [vmem:[#allocation8 + $0x138] sm:$0xff]
    %v401 = vld [vmem:[#allocation8 + $0x140] sm:$0xff]
    %v402 = vld [vmem:[#allocation8 + $0x148] sm:$0xff]
    %v403 = vld [vmem:[#allocation8 + $0x150] sm:$0xff]
    %v404 = vld [vmem:[#allocation8 + $0x158] sm:$0xff]
    %v405 = vld [vmem:[#allocation8 + $0x160] sm:$0xff]
    %v406 = vld [vmem:[#allocation8 + $0x168] sm:$0xff]
    %v407 = vld [vmem:[#allocation8 + $0x170] sm:$0xff]
    %v408 = vld [vmem:[#allocation8 + $0x178] sm:$0xff]
    %v409 = vld [vmem:[#allocation8 + $0x180] sm:$0xff]
    %v410 = vld [vmem:[#allocation8 + $0x188] sm:$0xff]
    %v411 = vld [vmem:[#allocation8 + $0x190] sm:$0xff]
    %v412 = vld [vmem:[#allocation8 + $0x198] sm:$0xff]
    %v413 = vld [vmem:[#allocation8 + $0x1a0] sm:$0xff]
    %v414 = vld [vmem:[#allocation8 + $0x1a8] sm:$0xff]
    %v415 = vld [vmem:[#allocation8 + $0x1b0] sm:$0xff]
    %v416 = vld [vmem:[#allocation8 + $0x1b8] sm:$0xff]
    %v417 = vld [vmem:[#allocation8 + $0x1c0] sm:$0xff]
    %v418 = vld [vmem:[#allocation8 + $0x1c8] sm:$0xff]
    %v419 = vld [vmem:[#allocation8 + $0x1d0] sm:$0xff]
    %v420 = vld [vmem:[#allocation8 + $0x1d8] sm:$0xff]
    %v421 = vld [vmem:[#allocation8 + $0x1e0] sm:$0xff]
    %v422 = vld [vmem:[#allocation8 + $0x1e8] sm:$0xff]
    %v423 = vld [vmem:[#allocation8 + $0x1f0] sm:$0xff]
    %v424 = vld [vmem:[#allocation8 + $0x1f8] sm:$0xff]
    %v425 = vld [vmem:[#allocation8 + $0x200] sm:$0xff]
    %v426 = vld [vmem:[#allocation8 + $0x208] sm:$0xff]
    %v427 = vld [vmem:[#allocation8 + $0x210] sm:$0xff]
    %v428 = vld [vmem:[#allocation8 + $0x218] sm:$0xff]
    %v429 = vld [vmem:[#allocation8 + $0x220] sm:$0xff]
    %v430 = vld [vmem:[#allocation8 + $0x228] sm:$0xff]
    %v431 = vld [vmem:[#allocation8 + $0x230] sm:$0xff]
    %v432 = vld [vmem:[#allocation8 + $0x238] sm:$0xff]
    %v433 = vld [vmem:[#allocation8 + $0x240] sm:$0xff]
    %v434 = vld [vmem:[#allocation8 + $0x248] sm:$0xff]
    %v435 = vld [vmem:[#allocation8 + $0x250] sm:$0xff]
    %v436 = vld [vmem:[#allocation8 + $0x258] sm:$0xff]
    %v437 = vld [vmem:[#allocation8 + $0x260] sm:$0xff]
    %v438 = vld [vmem:[#allocation8 + $0x268] sm:$0xff]
    %v439 = vld [vmem:[#allocation8 + $0x270] sm:$0xff]
    %v440 = vld [vmem:[#allocation8 + $0x278] sm:$0xff]
    %v441 = vld [vmem:[#allocation8 + $0x280] sm:$0xff]
    %v442 = vld [vmem:[#allocation8 + $0x288] sm:$0xff]
    %v443 = vld [vmem:[#allocation8 + $0x290] sm:$0xff]
    %v444 = vld [vmem:[#allocation8 + $0x298] sm:$0xff]
    %v445 = vld [vmem:[#allocation8 + $0x2a0] sm:$0xff]
    %v446 = vld [vmem:[#allocation8 + $0x2a8] sm:$0xff]
    %v447 = vld [vmem:[#allocation8 + $0x2b0] sm:$0xff]
    %v448 = vld [vmem:[#allocation8 + $0x2b8] sm:$0xff]
    %v449 = vld [vmem:[#allocation8 + $0x2c0] sm:$0xff]
    %v450 = vld [vmem:[#allocation8 + $0x2c8] sm:$0xff]
    %v451 = vld [vmem:[#allocation8 + $0x2d0] sm:$0xff]
    %v452 = vld [vmem:[#allocation8 + $0x2d8] sm:$0xff]
    %v453 = vld [vmem:[#allocation8 + $0x2e0] sm:$0xff]
    %v454 = vld [vmem:[#allocation8 + $0x2e8] sm:$0xff]
    %v455 = vld [vmem:[#allocation8 + $0x2f0] sm:$0xff]
    %v456 = vld [vmem:[#allocation8 + $0x2f8] sm:$0xff]
    %v457 = vld [vmem:[#allocation8 + $0x300] sm:$0xff]
    %v458 = vld [vmem:[#allocation8 + $0x308] sm:$0xff]
    %v459 = vld [vmem:[#allocation8 + $0x310] sm:$0xff]
    %v460 = vld [vmem:[#allocation8 + $0x318] sm:$0xff]
    %v461 = vld [vmem:[#allocation8 + $0x320] sm:$0xff]
    %v462 = vld [vmem:[#allocation8 + $0x328] sm:$0xff]
    %v463 = vld [vmem:[#allocation8 + $0x330] sm:$0xff]
    %v464 = vld [vmem:[#allocation8 + $0x338] sm:$0xff]
    %v465 = vld [vmem:[#allocation8 + $0x340] sm:$0xff]
    %v466 = vld [vmem:[#allocation8 + $0x348] sm:$0xff]
    %v467 = vld [vmem:[#allocation8 + $0x350] sm:$0xff]
    %v468 = vld [vmem:[#allocation8 + $0x358] sm:$0xff]
    %v469 = vld [vmem:[#allocation8 + $0x360] sm:$0xff]
    %v470 = vld [vmem:[#allocation8 + $0x368] sm:$0xff]
    %v471 = vld [vmem:[#allocation8 + $0x370] sm:$0xff]
    %v472 = vld [vmem:[#allocation8 + $0x378] sm:$0xff]
    %v473 = vld [vmem:[#allocation8 + $0x380] sm:$0xff]
    %v474 = vld [vmem:[#allocation8 + $0x388] sm:$0xff]
    %v475 = vld [vmem:[#allocation8 + $0x390] sm:$0xff]
    %v476 = vld [vmem:[#allocation8 + $0x398] sm:$0xff]
    %v477 = vld [vmem:[#allocation8 + $0x3a0] sm:$0xff]
    %v478 = vld [vmem:[#allocation8 + $0x3a8] sm:$0xff]
    %v479 = vld [vmem:[#allocation8 + $0x3b0] sm:$0xff]
    %v480 = vld [vmem:[#allocation8 + $0x3b8] sm:$0xff]
    %v481 = vld [vmem:[#allocation8 + $0x3c0] sm:$0xff]
    %v482 = vld [vmem:[#allocation8 + $0x3c8] sm:$0xff]
    %v483 = vld [vmem:[#allocation8 + $0x3d0] sm:$0xff]
    %v484 = vld [vmem:[#allocation8 + $0x3d8] sm:$0xff]
    %v485 = vld [vmem:[#allocation8 + $0x3e0] sm:$0xff]
    %v486 = vld [vmem:[#allocation8 + $0x3e8] sm:$0xff]
    %v487 = vld [vmem:[#allocation8 + $0x3f0] sm:$0xff]
    %v488 = vld [vmem:[#allocation8 + $0x3f8] sm:$0xff]
    %489 = vmatprep.subr.mxu0 %v362
    %490 = vmatpush1.msra.mxu0 %v361
    %491 = vmatprep.subr.mxu0 %v370
    %492 = vmatpush1.msra.mxu0 %v369
    %493 = vmatprep.subr.mxu0 %v378
    %494 = vmatpush1.msra.mxu0 %v377
    %495 = vmatprep.subr.mxu0 %v386
    %496 = vmatpush1.msra.mxu0 %v385
    %497 = vmatprep.subr.mxu0 %v394
    %498 = vmatpush1.msra.mxu0 %v393
    %499 = vmatprep.subr.mxu0 %v402
    %500 = vmatpush1.msra.mxu0 %v401
    %501 = vmatprep.subr.mxu0 %v410
    %502 = vmatpush1.msra.mxu0 %v409
    %503 = vmatprep.subr.mxu0 %v418
    %504 = vmatpush1.msra.mxu0 %v417
    %505 = vmatprep.subr.mxu0 %v426
    %506 = vmatpush1.msra.mxu0 %v425
    %507 = vmatprep.subr.mxu0 %v434
    %508 = vmatpush1.msra.mxu0 %v433
    %509 = vmatprep.subr.mxu0 %v442
    %510 = vmatpush1.msra.mxu0 %v441
    %511 = vmatprep.subr.mxu0 %v450
    %512 = vmatpush1.msra.mxu0 %v449
    %513 = vmatprep.subr.mxu0 %v458
    %514 = vmatpush1.msra.mxu0 %v457
    %515 = vmatprep.subr.mxu0 %v466
    %516 = vmatpush1.msra.mxu0 %v465
    %517 = vmatprep.subr.mxu0 %v474
    %518 = vmatpush1.msra.mxu0 %v473
    %519 = vmatprep.subr.mxu0 %v482
    %520 = vmatpush1.msra.mxu0 %v481
    %521 = vmatprep.subr.mxu0 0.0
    %522 = vmatpush1.msra.mxu0 0.0
    %523 = vmatprep.subr.mxu0 0.0
    %524 = vmatpush1.msra.mxu0 0.0
    %525 = vmatprep.subr.mxu0 0.0
    %526 = vmatpush1.msra.mxu0 0.0
    %527 = vmatprep.subr.mxu0 0.0
    %528 = vmatpush1.msra.mxu0 0.0
    %529 = vmatprep.subr.mxu0 0.0
    %530 = vmatpush1.msra.mxu0 0.0
    %531 = vmatprep.subr.mxu0 0.0
    %532 = vmatpush1.msra.mxu0 0.0
    %533 = vmatprep.subr.mxu0 0.0
    %534 = vmatpush1.msra.mxu0 0.0
    %535 = vmatprep.subr.mxu0 0.0
    %536 = vmatpush1.msra.mxu0 0.0
    %537 = vmatprep.subr.mxu0 0.0
    %538 = vmatpush1.msra.mxu0 0.0
    %539 = vmatprep.subr.mxu0 0.0
    %540 = vmatpush1.msra.mxu0 0.0
    %541 = vmatprep.subr.mxu0 0.0
    %542 = vmatpush1.msra.mxu0 0.0
    %543 = vmatprep.subr.mxu0 0.0
    %544 = vmatpush1.msra.mxu0 0.0
    %545 = vmatprep.subr.mxu0 0.0
    %546 = vmatpush1.msra.mxu0 0.0
    %547 = vmatprep.subr.mxu0 0.0
    %548 = vmatpush1.msra.mxu0 0.0
    %549 = vmatprep.subr.mxu0 0.0
    %550 = vmatpush1.msra.mxu0 0.0
    %551 = vmatprep.subr.mxu0 0.0
    %552 = vmatpush1.msra.mxu0 0.0
    %553 = vmatprep.mubr.f32.mxu0 0.0
    %554 = vmatmul.mubr.f32.gmra.mrb[0].mxu0 %v309
    %v555 = vpop.f32.mrb[0].mxu0
    %v556 = vadd.f32 0.0, %v555
    %v557 = vpop.f32.mrb[0].mxu0
    %v558 = vadd.f32 0.0, %v557
    %559 = vdwg.mxu0
    %560 = vmatprep.subr.mxu0 %v364
    %561 = vmatpush1.msra.mxu0 %v363
    %562 = vmatprep.subr.mxu0 %v372
    %563 = vmatpush1.msra.mxu0 %v371
    %564 = vmatprep.subr.mxu0 %v380
    %565 = vmatpush1.msra.mxu0 %v379
    %566 = vmatprep.subr.mxu0 %v388
    %567 = vmatpush1.msra.mxu0 %v387
    %568 = vmatprep.subr.mxu0 %v396
    %569 = vmatpush1.msra.mxu0 %v395
    %570 = vmatprep.subr.mxu0 %v404
    %571 = vmatpush1.msra.mxu0 %v403
    %572 = vmatprep.subr.mxu0 %v412
    %573 = vmatpush1.msra.mxu0 %v411
    %574 = vmatprep.subr.mxu0 %v420
    %575 = vmatpush1.msra.mxu0 %v419
    %576 = vmatprep.subr.mxu0 %v428
    %577 = vmatpush1.msra.mxu0 %v427
    %578 = vmatprep.subr.mxu0 %v436
    %579 = vmatpush1.msra.mxu0 %v435
    %580 = vmatprep.subr.mxu0 %v444
    %581 = vmatpush1.msra.mxu0 %v443
    %582 = vmatprep.subr.mxu0 %v452
    %583 = vmatpush1.msra.mxu0 %v451
    %584 = vmatprep.subr.mxu0 %v460
    %585 = vmatpush1.msra.mxu0 %v459
    %586 = vmatprep.subr.mxu0 %v468
    %587 = vmatpush1.msra.mxu0 %v467
    %588 = vmatprep.subr.mxu0 %v476
    %589 = vmatpush1.msra.mxu0 %v475
    %590 = vmatprep.subr.mxu0 %v484
    %591 = vmatpush1.msra.mxu0 %v483
    %592 = vmatprep.subr.mxu0 0.0
    %593 = vmatpush1.msra.mxu0 0.0
    %594 = vmatprep.subr.mxu0 0.0
    %595 = vmatpush1.msra.mxu0 0.0
    %596 = vmatprep.subr.mxu0 0.0
    %597 = vmatpush1.msra.mxu0 0.0
    %598 = vmatprep.subr.mxu0 0.0
    %599 = vmatpush1.msra.mxu0 0.0
    %600 = vmatprep.subr.mxu0 0.0
    %601 = vmatpush1.msra.mxu0 0.0
    %602 = vmatprep.subr.mxu0 0.0
    %603 = vmatpush1.msra.mxu0 0.0
    %604 = vmatprep.subr.mxu0 0.0
    %605 = vmatpush1.msra.mxu0 0.0
    %606 = vmatprep.subr.mxu0 0.0
    %607 = vmatpush1.msra.mxu0 0.0
    %608 = vmatprep.subr.mxu0 0.0
    %609 = vmatpush1.msra.mxu0 0.0
    %610 = vmatprep.subr.mxu0 0.0
    %611 = vmatpush1.msra.mxu0 0.0
    %612 = vmatprep.subr.mxu0 0.0
    %613 = vmatpush1.msra.mxu0 0.0
    %614 = vmatprep.subr.mxu0 0.0
    %615 = vmatpush1.msra.mxu0 0.0
    %616 = vmatprep.subr.mxu0 0.0
    %617 = vmatpush1.msra.mxu0 0.0
    %618 = vmatprep.subr.mxu0 0.0
    %619 = vmatpush1.msra.mxu0 0.0
    %620 = vmatprep.subr.mxu0 0.0
    %621 = vmatpush1.msra.mxu0 0.0
    %622 = vmatprep.subr.mxu0 0.0
    %623 = vmatpush1.msra.mxu0 0.0
    %624 = vmatprep.mubr.f32.mxu0 0.0
    %625 = vmatmul.mubr.f32.gmra.mrb[0].mxu0 %v309
    %v626 = vpop.f32.mrb[0].mxu0
    %v627 = vadd.f32 0.0, %v626
    %v628 = vpop.f32.mrb[0].mxu0
    %v629 = vadd.f32 0.0, %v628
    %630 = vdwg.mxu0
    %631 = vmatprep.subr.mxu0 %v366
    %632 = vmatpush1.msra.mxu0 %v365
    %633 = vmatprep.subr.mxu0 %v374
    %634 = vmatpush1.msra.mxu0 %v373
    %635 = vmatprep.subr.mxu0 %v382
    %636 = vmatpush1.msra.mxu0 %v381
    %637 = vmatprep.subr.mxu0 %v390
    %638 = vmatpush1.msra.mxu0 %v389
    %639 = vmatprep.subr.mxu0 %v398
    %640 = vmatpush1.msra.mxu0 %v397
    %641 = vmatprep.subr.mxu0 %v406
    %642 = vmatpush1.msra.mxu0 %v405
    %643 = vmatprep.subr.mxu0 %v414
    %644 = vmatpush1.msra.mxu0 %v413
    %645 = vmatprep.subr.mxu0 %v422
    %646 = vmatpush1.msra.mxu0 %v421
    %647 = vmatprep.subr.mxu0 %v430
    %648 = vmatpush1.msra.mxu0 %v429
    %649 = vmatprep.subr.mxu0 %v438
    %650 = vmatpush1.msra.mxu0 %v437
    %651 = vmatprep.subr.mxu0 %v446
    %652 = vmatpush1.msra.mxu0 %v445
    %653 = vmatprep.subr.mxu0 %v454
    %654 = vmatpush1.msra.mxu0 %v453
    %655 = vmatprep.subr.mxu0 %v462
    %656 = vmatpush1.msra.mxu0 %v461
    %657 = vmatprep.subr.mxu0 %v470
    %658 = vmatpush1.msra.mxu0 %v469
    %659 = vmatprep.subr.mxu0 %v478
    %660 = vmatpush1.msra.mxu0 %v477
    %661 = vmatprep.subr.mxu0 %v486
    %662 = vmatpush1.msra.mxu0 %v485
    %663 = vmatprep.subr.mxu0 0.0
    %664 = vmatpush1.msra.mxu0 0.0
    %665 = vmatprep.subr.mxu0 0.0
    %666 = vmatpush1.msra.mxu0 0.0
    %667 = vmatprep.subr.mxu0 0.0
    %668 = vmatpush1.msra.mxu0 0.0
    %669 = vmatprep.subr.mxu0 0.0
    %670 = vmatpush1.msra.mxu0 0.0
    %671 = vmatprep.subr.mxu0 0.0
    %672 = vmatpush1.msra.mxu0 0.0
    %673 = vmatprep.subr.mxu0 0.0
    %674 = vmatpush1.msra.mxu0 0.0
    %675 = vmatprep.subr.mxu0 0.0
    %676 = vmatpush1.msra.mxu0 0.0
    %677 = vmatprep.subr.mxu0 0.0
    %678 = vmatpush1.msra.mxu0 0.0
    %679 = vmatprep.subr.mxu0 0.0
    %680 = vmatpush1.msra.mxu0 0.0
    %681 = vmatprep.subr.mxu0 0.0
    %682 = vmatpush1.msra.mxu0 0.0
    %683 = vmatprep.subr.mxu0 0.0
    %684 = vmatpush1.msra.mxu0 0.0
    %685 = vmatprep.subr.mxu0 0.0
    %686 = vmatpush1.msra.mxu0 0.0
    %687 = vmatprep.subr.mxu0 0.0
    %688 = vmatpush1.msra.mxu0 0.0
    %689 = vmatprep.subr.mxu0 0.0
    %690 = vmatpush1.msra.mxu0 0.0
    %691 = vmatprep.subr.mxu0 0.0
    %692 = vmatpush1.msra.mxu0 0.0
    %693 = vmatprep.subr.mxu0 0.0
    %694 = vmatpush1.msra.mxu0 0.0
    %695 = vmatprep.mubr.f32.mxu0 0.0
    %696 = vmatmul.mubr.f32.gmra.mrb[0].mxu0 %v309
    %v697 = vpop.f32.mrb[0].mxu0
    %v698 = vadd.f32 0.0, %v697
    %v699 = vpop.f32.mrb[0].mxu0
    %v700 = vadd.f32 0.0, %v699
    %701 = vdwg.mxu0
    %702 = vmatprep.subr.mxu0 %v368
    %703 = vmatpush1.msra.mxu0 %v367
    %704 = vmatprep.subr.mxu0 %v376
    %705 = vmatpush1.msra.mxu0 %v375
    %706 = vmatprep.subr.mxu0 %v384
    %707 = vmatpush1.msra.mxu0 %v383
    %708 = vmatprep.subr.mxu0 %v392
    %709 = vmatpush1.msra.mxu0 %v391
    %710 = vmatprep.subr.mxu0 %v400
    %711 = vmatpush1.msra.mxu0 %v399
    %712 = vmatprep.subr.mxu0 %v408
    %713 = vmatpush1.msra.mxu0 %v407
    %714 = vmatprep.subr.mxu0 %v416
    %715 = vmatpush1.msra.mxu0 %v415
    %716 = vmatprep.subr.mxu0 %v424
    %717 = vmatpush1.msra.mxu0 %v423
    %718 = vmatprep.subr.mxu0 %v432
    %719 = vmatpush1.msra.mxu0 %v431
    %720 = vmatprep.subr.mxu0 %v440
    %721 = vmatpush1.msra.mxu0 %v439
    %722 = vmatprep.subr.mxu0 %v448
    %723 = vmatpush1.msra.mxu0 %v447
    %724 = vmatprep.subr.mxu0 %v456
    %725 = vmatpush1.msra.mxu0 %v455
    %726 = vmatprep.subr.mxu0 %v464
    %727 = vmatpush1.msra.mxu0 %v463
    %728 = vmatprep.subr.mxu0 %v472
    %729 = vmatpush1.msra.mxu0 %v471
    %730 = vmatprep.subr.mxu0 %v480
    %731 = vmatpush1.msra.mxu0 %v479
    %732 = vmatprep.subr.mxu0 %v488
    %733 = vmatpush1.msra.mxu0 %v487
    %734 = vmatprep.subr.mxu0 0.0
    %735 = vmatpush1.msra.mxu0 0.0
    %736 = vmatprep.subr.mxu0 0.0
    %737 = vmatpush1.msra.mxu0 0.0
    %738 = vmatprep.subr.mxu0 0.0
    %739 = vmatpush1.msra.mxu0 0.0
    %740 = vmatprep.subr.mxu0 0.0
    %741 = vmatpush1.msra.mxu0 0.0
    %742 = vmatprep.subr.mxu0 0.0
    %743 = vmatpush1.msra.mxu0 0.0
    %744 = vmatprep.subr.mxu0 0.0
    %745 = vmatpush1.msra.mxu0 0.0
    %746 = vmatprep.subr.mxu0 0.0
    %747 = vmatpush1.msra.mxu0 0.0
    %748 = vmatprep.subr.mxu0 0.0
    %749 = vmatpush1.msra.mxu0 0.0
    %750 = vmatprep.subr.mxu0 0.0
    %751 = vmatpush1.msra.mxu0 0.0
    %752 = vmatprep.subr.mxu0 0.0
    %753 = vmatpush1.msra.mxu0 0.0
    %754 = vmatprep.subr.mxu0 0.0
    %755 = vmatpush1.msra.mxu0 0.0
    %756 = vmatprep.subr.mxu0 0.0
    %757 = vmatpush1.msra.mxu0 0.0
    %758 = vmatprep.subr.mxu0 0.0
    %759 = vmatpush1.msra.mxu0 0.0
    %760 = vmatprep.subr.mxu0 0.0
    %761 = vmatpush1.msra.mxu0 0.0
    %762 = vmatprep.subr.mxu0 0.0
    %763 = vmatpush1.msra.mxu0 0.0
    %764 = vmatprep.subr.mxu0 0.0
    %765 = vmatpush1.msra.mxu0 0.0
    %766 = vmatprep.mubr.f32.mxu0 0.0
    %767 = vmatmul.mubr.f32.gmra.mrb[0].mxu0 %v309
    %v768 = vpop.f32.mrb[0].mxu0
    %v769 = vadd.f32 0.0, %v768
    %v770 = vpop.f32.mrb[0].mxu0
    %v771 = vadd.f32 0.0, %v770
    %772 = vdwg.mxu0
    %v773 = vlaneseq
    %v774 = vshrl.u32 %v773, 7
    %v775 = vsub.s32 0, %v774
    %v776 = vrot.slane %v360, %v775
    %v777 = vsub.f32 %v776, %v556
    %v778 = vlaneseq
    %v779 = vshrl.u32 %v778, 7
    %v780 = vsub.s32 1, %v779
    %v781 = vrot.slane %v360, %v780
    %v782 = vsub.f32 %v781, %v558
    %v783 = vlaneseq
    %v784 = vshrl.u32 %v783, 7
    %v785 = vsub.s32 2, %v784
    %v786 = vrot.slane %v360, %v785
    %v787 = vsub.f32 %v786, %v627
    %v788 = vlaneseq
    %v789 = vshrl.u32 %v788, 7
    %v790 = vsub.s32 3, %v789
    %v791 = vrot.slane %v360, %v790
    %v792 = vsub.f32 %v791, %v629
    %v793 = vlaneseq
    %v794 = vshrl.u32 %v793, 7
    %v795 = vsub.s32 4, %v794
    %v796 = vrot.slane %v360, %v795
    %v797 = vsub.f32 %v796, %v698
    %v798 = vlaneseq
    %v799 = vshrl.u32 %v798, 7
    %v800 = vsub.s32 5, %v799
    %v801 = vrot.slane %v360, %v800
    %v802 = vsub.f32 %v801, %v700
    %v803 = vlaneseq
    %v804 = vshrl.u32 %v803, 7
    %v805 = vsub.s32 6, %v804
    %v806 = vrot.slane %v360, %v805
    %v807 = vsub.f32 %v806, %v769
    %v808 = vlaneseq
    %v809 = vshrl.u32 %v808, 7
    %v810 = vsub.s32 7, %v809
    %v811 = vrot.slane %v360, %v810
    %v812 = vsub.f32 %v811, %v771
    %v813 = vmax.f32 %v777, %v782
    %v814 = vmax.f32 %v813, %v787
    %v815 = vmax.f32 %v814, %v792
    %v816 = vmax.f32 %v815, %v797
    %v817 = vmax.f32 %v816, %v802
    %v818 = vmax.f32 %v817, %v807
    %v819 = vmax.f32 %v818, %v812
    %v820 = vsub.f32 %v777, %v819
    %v821 = vmul.f32 %v820, 1.442695
    %v822 = vpow.pop %v821
    %v823 = vsub.f32 %v782, %v819
    %v824 = vmul.f32 %v823, 1.442695
    %v825 = vpow.pop %v824
    %v826 = vsub.f32 %v787, %v819
    %v827 = vmul.f32 %v826, 1.442695
    %v828 = vpow.pop %v827
    %v829 = vsub.f32 %v792, %v819
    %v830 = vmul.f32 %v829, 1.442695
    %v831 = vpow.pop %v830
    %v832 = vsub.f32 %v797, %v819
    %v833 = vmul.f32 %v832, 1.442695
    %v834 = vpow.pop %v833
    %v835 = vsub.f32 %v802, %v819
    %v836 = vmul.f32 %v835, 1.442695
    %v837 = vpow.pop %v836
    %v838 = vsub.f32 %v807, %v819
    %v839 = vmul.f32 %v838, 1.442695
    %v840 = vpow.pop %v839
    %v841 = vsub.f32 %v812, %v819
    %v842 = vmul.f32 %v841, 1.442695
    %v843 = vpow.pop %v842
    %v844 = vadd.f32 %v822, 0.0
    %v845 = vadd.f32 %v556, %v819
    %v846 = vmul.f32 %v845, 1.442695
    %v847 = vpow.pop %v846
    %v848 = vmul.f32 %v844, %v847
    %849 = vst [vmem:[#allocation10] sm:$0xff] %v848
    %v850 = vadd.f32 %v844, %v825
    %v851 = vadd.f32 %v558, %v819
    %v852 = vmul.f32 %v851, 1.442695
    %v853 = vpow.pop %v852
    %v854 = vmul.f32 %v850, %v853
    %855 = vst [vmem:[#allocation10 + $0x8] sm:$0xff] %v854
    %v856 = vadd.f32 %v850, %v828
    %v857 = vadd.f32 %v627, %v819
    %v858 = vmul.f32 %v857, 1.442695
    %v859 = vpow.pop %v858
    %v860 = vmul.f32 %v856, %v859
    %861 = vst [vmem:[#allocation10 + $0x10] sm:$0xff] %v860
    %v862 = vadd.f32 %v856, %v831
    %v863 = vadd.f32 %v629, %v819
    %v864 = vmul.f32 %v863, 1.442695
    %v865 = vpow.pop %v864
    %v866 = vmul.f32 %v862, %v865
    %867 = vst [vmem:[#allocation10 + $0x18] sm:$0xff] %v866
    %v868 = vadd.f32 %v862, %v834
    %v869 = vadd.f32 %v698, %v819
    %v870 = vmul.f32 %v869, 1.442695
    %v871 = vpow.pop %v870
    %v872 = vmul.f32 %v868, %v871
    %873 = vst [vmem:[#allocation10 + $0x20] sm:$0xff] %v872
    %v874 = vadd.f32 %v868, %v837
    %v875 = vadd.f32 %v700, %v819
    %v876 = vmul.f32 %v875, 1.442695
    %v877 = vpow.pop %v876
    %v878 = vmul.f32 %v874, %v877
    %879 = vst [vmem:[#allocation10 + $0x28] sm:$0xff] %v878
    %v880 = vadd.f32 %v874, %v840
    %v881 = vadd.f32 %v769, %v819
    %v882 = vmul.f32 %v881, 1.442695
    %v883 = vpow.pop %v882
    %v884 = vmul.f32 %v880, %v883
    %885 = vst [vmem:[#allocation10 + $0x30] sm:$0xff] %v884
    %v886 = vadd.f32 %v880, %v843
    %v887 = vadd.f32 %v771, %v819
    %v888 = vmul.f32 %v887, 1.442695
    %v889 = vpow.pop %v888
    %v890 = vmul.f32 %v886, %v889
    %891 = vst [vmem:[#allocation10 + $0x38] sm:$0xff] %v890
    // Predicated region
    $region38: #{tpu_custom_call.1} parent=1 // pred_check
      _
    $region39: #{tpu_custom_call.1} parent=1 // pred_check_branch
      %893 = sbr.rel (0) target = $region41
    $region40: #{tpu_custom_call.1} parent=1 // pred_region
      %s895 = ssub.s32 1024, 1024
      %896 = vsyncadd [#allocation4], %s895
      %s898 = sshll.u32 [#allocation10], 4
      %s899 = int_to_ptr.vmem [resolvable:$true] %s898
      %901 = dma.vmem_to_hbm [thread:$0]  %s899, 1024, %s5, [#allocation4]
    $region41: #{tpu_custom_call.1} parent=1 // pred_fallthru
      _
    // Predicated region
    $region42: #{tpu_custom_call.1} parent=1 // pred_check
      _
    $region43: #{tpu_custom_call.1} parent=1 // pred_check_branch
      %903 = sbr.rel (0) target = $region45
    $region44: #{tpu_custom_call.1} parent=1 // pred_region
      %904 = dma.done [#allocation4], 1024
    $region45: #{tpu_custom_call.1} parent=1 // pred_fallthru
      _
    %905 = vsyncpa [#allocation3], 1
    %906 = vsyncpa [#allocation6], 1
    %907 = vsyncpa [#allocation9], 1
    %908 = vsyncpa [#allocation4], 1

</llo_original>
